<compile_context>
chip_gen: v5e
topology: v5e:2x2
jax: 0.10.0
libtpu: 0.0.40
codegen_flags: <defaults>
</compile_context>

<pallas_src>
import functools

import jax
import jax.numpy as jnp
from jax.experimental import pallas as pl
from jax.experimental.pallas import tpu as pltpu

LANE = 128        # pad feature dims to the 128-lane vreg width (lane-dense)
ROW_ALIGN = 16    # bf16 sublane packing is (16, 128); 16 also covers f32's 8


def _round_up(x, m):
    return ((x + m - 1) // m) * m


def _fused_mlp_kernel(n_layers, x_ref, *refs):
    """Whole MLP on one VMEM-resident activation tile.

    refs = (w0, b0, w1, b1, ..., w_{L-1}, b_{L-1}, out).
    Inputs/params are bf16 and lane-dense (128-padded); every dot accumulates
    in f32 on the MXU; the final store is a full-lane f32 vst.
    """
    o_ref = refs[-1]
    p_refs = refs[:-1]
    h = x_ref[...]                                 # bf16 (tm, k0_pad)
    for i in range(n_layers):
        w = p_refs[2 * i][...]                     # bf16 (k_pad, n_pad)
        b = p_refs[2 * i + 1][...]                 # bf16 (1, n_pad)
        acc = jnp.dot(h, w, preferred_element_type=jnp.float32)
        acc = acc + b.astype(jnp.float32)          # broadcast over rows
        if i < n_layers - 1:
            h = jnp.maximum(acc, 0.0).astype(jnp.bfloat16)
        else:
            o_ref[...] = acc.astype(o_ref.dtype)


def fused_mlp(x, padded_params, *, tile_m=512):
    """Run the whole padded MLP in a single pallas_call.

    x:             (m, k0) un-padded activations (any float dtype).
    padded_params: list of (w_pad bf16 (k_pad, n_pad), b_pad bf16 (1, n_pad)),
                   feature dims already 128-padded at init time.
    Returns the padded f32 output (m_pad, n_last_pad); caller slices the real
    rows/cols.
    """
    n_layers = len(padded_params)
    m, k0 = x.shape
    k0_pad = padded_params[0][0].shape[0]
    n_last_pad = padded_params[-1][0].shape[1]

    # --- M tiling ---------------------------------------------------------
    # tiny batch -> one tile; moderate batch -> force 2 grid steps so the
    # "parallel" axis engages both v7x TensorCores; large batch -> tile_m.
    if m <= ROW_ALIGN:
        tm = _round_up(m, ROW_ALIGN)
        m_pad = tm
    elif m <= tile_m:
        tm = _round_up(pl.cdiv(m, 2), ROW_ALIGN)
        m_pad = 2 * tm
    else:
        tm = tile_m
        m_pad = _round_up(m, tile_m)
    grid = (m_pad // tm,)

    # Single pad (rows + cols at once) fused with the bf16 cast under jit.
    x = jnp.pad(x, ((0, m_pad - m), (0, k0_pad - k0))).astype(jnp.bfloat16)

    # Activations/output tiled over M; weights & biases are whole-array blocks
    # whose index_map always returns (0, 0) -> VMEM-resident across grid steps.
    in_specs = [pl.BlockSpec((tm, k0_pad), lambda i: (i, 0))]
    flat_params = []
    for (w_pad, b_pad) in padded_params:
        in_specs.append(pl.BlockSpec(w_pad.shape, lambda i: (0, 0)))
        in_specs.append(pl.BlockSpec(b_pad.shape, lambda i: (0, 0)))
        flat_params.extend((w_pad, b_pad))

    # VMEM budget: (double-buffered) resident params + in/out tiles + scratch,
    # capped at v7x's 64 MiB physical so the request is generation-safe.
    param_bytes = sum(int(w.size) * 2 + int(b.size) * 2
                      for (w, b) in padded_params)
    max_n_pad = max(int(w.shape[1]) for (w, _) in padded_params)
    act_bytes = (2 * tm * k0_pad * 2          # bf16 input tile, double-buffered
                 + 2 * tm * n_last_pad * 4    # f32 output tile, double-buffered
                 + 2 * tm * max_n_pad * 4)    # in-kernel intermediate headroom
    vmem_limit = min(64 << 20,
                     max(2 * param_bytes + act_bytes + (4 << 20), 8 << 20))

    flops = 2 * m_pad * sum(int(w.shape[0]) * int(w.shape[1])
                            for (w, _) in padded_params)
    bytes_accessed = (2 * m_pad * k0_pad          # bf16 input
                      + param_bytes               # bf16 params
                      + 4 * m_pad * n_last_pad)   # f32 output

    kernel = functools.partial(_fused_mlp_kernel, n_layers)
    return pl.pallas_call(
        kernel,
        out_shape=jax.ShapeDtypeStruct((m_pad, n_last_pad), jnp.float32),
        grid=grid,
        in_specs=in_specs,
        out_specs=pl.BlockSpec((tm, n_last_pad), lambda i: (i, 0)),
        compiler_params=pltpu.CompilerParams(
            dimension_semantics=("parallel",),
            vmem_limit_bytes=int(vmem_limit)),
        cost_estimate=pl.CostEstimate(
            flops=int(flops), transcendentals=0,
            bytes_accessed=int(bytes_accessed)),
    )(x, *flat_params)


def _mlp_forward(x, *flat_params, in_dim, out_dim, tile_m):
    """Whole forward (reshape -> pad/cast -> fused kernel -> slice); jitted."""
    h = x.reshape(-1, in_dim)                 # torch: x.view(-1, size[0])
    m = h.shape[0]
    padded = [(flat_params[2 * i], flat_params[2 * i + 1])
              for i in range(len(flat_params) // 2)]
    out_pad = fused_mlp(h, padded, tile_m=tile_m)
    return out_pad[:m, :out_dim]


class LeNetFC:
    """JAX/Pallas port of the PyTorch LeNetFC module (fused single-kernel MLP)."""

    def __init__(self, perceptrons, key, *, tile_m=512):
        self.size = list(perceptrons)
        self.n_layers = len(perceptrons) - 1
        self.params = []          # f32 un-padded (torch-equivalent) parameters
        self.padded_params = []   # bf16, lane-dense, zero-padded to 128 multiples
        n_prev = perceptrons[0]
        for n_curr in perceptrons[1:]:
            key, kw, kb = jax.random.split(key, 3)
            # Match torch.nn.Linear default init: U(-1/sqrt(fan_in), 1/sqrt(fan_in)).
            bound = 1.0 / (n_prev ** 0.5)
            w = jax.random.uniform(kw, (n_prev, n_curr), jnp.float32,
                                   minval=-bound, maxval=bound)
            b = jax.random.uniform(kb, (n_curr,), jnp.float32,
                                   minval=-bound, maxval=bound)
            self.params.append((w, b))

            # Zero-pad + bf16-cast once, at init time.
            k_pad = _round_up(n_prev, LANE)
            n_pad = _round_up(n_curr, LANE)
            w_pad = (jnp.zeros((k_pad, n_pad), jnp.bfloat16)
                     .at[:n_prev, :n_curr].set(w.astype(jnp.bfloat16)))
            b_pad = (jnp.zeros((1, n_pad), jnp.bfloat16)
                     .at[0, :n_curr].set(b.astype(jnp.bfloat16)))
            self.padded_params.append((w_pad, b_pad))
            n_prev = n_curr

        self._flat = tuple(p for pair in self.padded_params for p in pair)
        self._forward = jax.jit(functools.partial(
            _mlp_forward, in_dim=self.size[0], out_dim=self.size[-1],
            tile_m=tile_m))

    def __call__(self, x):
        return self._forward(x, *self._flat)


if __name__ == "__main__":
    key = jax.random.PRNGKey(0)
    k_in, k_params = jax.random.split(key)

    # perceptrons = [64, 32, 32, 16]; input (2, 4, 16) flattens to (2, 64).
    perceptrons = [64, 32, 32, 16]
    x = jax.random.normal(k_in, (2, 4, 16), jnp.float32)

    model = LeNetFC(perceptrons, k_params)
    out = jax.block_until_ready(model(x))

    # Reference with the SAME math as the kernel (bf16 storage, f32 accumulate).
    href = x.reshape(-1, perceptrons[0]).astype(jnp.bfloat16)
    for i, (w, b) in enumerate(model.params):
        acc = jnp.dot(href, w.astype(jnp.bfloat16),
                      preferred_element_type=jnp.float32)
        acc = acc + b.astype(jnp.bfloat16).astype(jnp.float32)
        if i < len(model.params) - 1:
            href = jnp.maximum(acc, 0.0).astype(jnp.bfloat16)
        else:
            href = acc

    assert out.shape == (2, perceptrons[-1])
    assert out.dtype == jnp.float32
    max_err = float(jnp.max(jnp.abs(out - href)))
    assert jnp.allclose(out, href, atol=2e-2, rtol=2e-2), max_err

    print("KERNEL_OK")
</pallas_src>

<mosaic_0001>
module attributes {stable_mosaic.version = 11 : i64} {
  func.func @_fused_mlp_kernel(%arg0: i32, %arg1: memref<16x128xbf16, #tpu.memory_space<vmem>>, %arg2: memref<128x128xbf16, #tpu.memory_space<vmem>>, %arg3: memref<1x128xbf16, #tpu.memory_space<vmem>>, %arg4: memref<128x128xbf16, #tpu.memory_space<vmem>>, %arg5: memref<1x128xbf16, #tpu.memory_space<vmem>>, %arg6: memref<128x128xbf16, #tpu.memory_space<vmem>>, %arg7: memref<1x128xbf16, #tpu.memory_space<vmem>>, %arg8: memref<16x128xf32, #tpu.memory_space<vmem>>) attributes {dimension_semantics = [#tpu.dimension_semantics<parallel>], iteration_bounds = array<i64: 1>, scalar_prefetch = 0 : i64, scratch_operands = 0 : i64, tpu.core_type = #tpu.core_type<tc>, window_params = [{transform_indices = @transform_0, window_bounds = array<i64: 16, 128>}, {pipeline_mode = #tpu.pipeline_mode<synchronous>, transform_indices = @transform_1, window_bounds = array<i64: 128, 128>}, {pipeline_mode = #tpu.pipeline_mode<synchronous>, transform_indices = @transform_2, window_bounds = array<i64: 1, 128>}, {pipeline_mode = #tpu.pipeline_mode<synchronous>, transform_indices = @transform_3, window_bounds = array<i64: 128, 128>}, {pipeline_mode = #tpu.pipeline_mode<synchronous>, transform_indices = @transform_4, window_bounds = array<i64: 1, 128>}, {pipeline_mode = #tpu.pipeline_mode<synchronous>, transform_indices = @transform_5, window_bounds = array<i64: 128, 128>}, {pipeline_mode = #tpu.pipeline_mode<synchronous>, transform_indices = @transform_6, window_bounds = array<i64: 1, 128>}, {transform_indices = @transform_7, window_bounds = array<i64: 16, 128>}]} {
    %c0 = arith.constant 0 : index
    %c0_0 = arith.constant 0 : index
    %0 = vector.load %arg1[%c0, %c0_0] : memref<16x128xbf16, #tpu.memory_space<vmem>>, vector<16x128xbf16>
    %c0_1 = arith.constant 0 : index
    %c0_2 = arith.constant 0 : index
    %1 = vector.load %arg2[%c0_1, %c0_2] : memref<128x128xbf16, #tpu.memory_space<vmem>>, vector<128x128xbf16>
    %c0_3 = arith.constant 0 : index
    %c0_4 = arith.constant 0 : index
    %2 = vector.load %arg3[%c0_3, %c0_4] : memref<1x128xbf16, #tpu.memory_space<vmem>>, vector<1x128xbf16>
    %cst = arith.constant dense<0.000000e+00> : vector<16x128xf32>
    %3 = tpu.matmul %0, %1, %cst {dimension_numbers = #tpu.dot_dimension_numbers<[1], [0], [0], [1], [0, 0, 1, 1], [], []>} : vector<16x128xbf16>, vector<128x128xbf16>, vector<16x128xf32> -> vector<16x128xf32>
    %4 = arith.extf %2 : vector<1x128xbf16> to vector<1x128xf32>
    %5 = vector.broadcast %4 : vector<1x128xf32> to vector<16x128xf32>
    %6 = arith.addf %3, %5 : vector<16x128xf32>
    %cst_5 = arith.constant 0.000000e+00 : f32
    %7 = vector.broadcast %cst_5 : f32 to vector<16x128xf32>
    %8 = arith.maximumf %6, %7 : vector<16x128xf32>
    %9 = arith.truncf %8 : vector<16x128xf32> to vector<16x128xbf16>
    %c0_6 = arith.constant 0 : index
    %c0_7 = arith.constant 0 : index
    %10 = vector.load %arg4[%c0_6, %c0_7] : memref<128x128xbf16, #tpu.memory_space<vmem>>, vector<128x128xbf16>
    %c0_8 = arith.constant 0 : index
    %c0_9 = arith.constant 0 : index
    %11 = vector.load %arg5[%c0_8, %c0_9] : memref<1x128xbf16, #tpu.memory_space<vmem>>, vector<1x128xbf16>
    %cst_10 = arith.constant dense<0.000000e+00> : vector<16x128xf32>
    %12 = tpu.matmul %9, %10, %cst_10 {dimension_numbers = #tpu.dot_dimension_numbers<[1], [0], [0], [1], [0, 0, 1, 1], [], []>} : vector<16x128xbf16>, vector<128x128xbf16>, vector<16x128xf32> -> vector<16x128xf32>
    %13 = arith.extf %11 : vector<1x128xbf16> to vector<1x128xf32>
    %14 = vector.broadcast %13 : vector<1x128xf32> to vector<16x128xf32>
    %15 = arith.addf %12, %14 : vector<16x128xf32>
    %cst_11 = arith.constant 0.000000e+00 : f32
    %16 = vector.broadcast %cst_11 : f32 to vector<16x128xf32>
    %17 = arith.maximumf %15, %16 : vector<16x128xf32>
    %18 = arith.truncf %17 : vector<16x128xf32> to vector<16x128xbf16>
    %c0_12 = arith.constant 0 : index
    %c0_13 = arith.constant 0 : index
    %19 = vector.load %arg6[%c0_12, %c0_13] : memref<128x128xbf16, #tpu.memory_space<vmem>>, vector<128x128xbf16>
    %c0_14 = arith.constant 0 : index
    %c0_15 = arith.constant 0 : index
    %20 = vector.load %arg7[%c0_14, %c0_15] : memref<1x128xbf16, #tpu.memory_space<vmem>>, vector<1x128xbf16>
    %cst_16 = arith.constant dense<0.000000e+00> : vector<16x128xf32>
    %21 = tpu.matmul %18, %19, %cst_16 {dimension_numbers = #tpu.dot_dimension_numbers<[1], [0], [0], [1], [0, 0, 1, 1], [], []>} : vector<16x128xbf16>, vector<128x128xbf16>, vector<16x128xf32> -> vector<16x128xf32>
    %22 = arith.extf %20 : vector<1x128xbf16> to vector<1x128xf32>
    %23 = vector.broadcast %22 : vector<1x128xf32> to vector<16x128xf32>
    %24 = arith.addf %21, %23 : vector<16x128xf32>
    %c0_17 = arith.constant 0 : index
    %c0_18 = arith.constant 0 : index
    %25 = vector.load %arg8[%c0_17, %c0_18] : memref<16x128xf32, #tpu.memory_space<vmem>>, vector<16x128xf32>
    tpu.vector_store %arg8[%c0_17, %c0_18], %24 {strides = array<i32>} : memref<16x128xf32, #tpu.memory_space<vmem>>, vector<16x128xf32>,
    return
  }
  func.func @transform_0(%arg0: i32) -> (i32, i32) {
    %c0_i32 = arith.constant 0 : i32
    %c0_i32_0 = arith.constant 0 : i32
    return %arg0, %c0_i32 : i32, i32
  }
  func.func @transform_1(%arg0: i32) -> (i32, i32) {
    %c0_i32 = arith.constant 0 : i32
    %c0_i32_0 = arith.constant 0 : i32
    %c0_i32_1 = arith.constant 0 : i32
    return %c0_i32, %c0_i32_0 : i32, i32
  }
  func.func @transform_2(%arg0: i32) -> (i32, i32) {
    %c0_i32 = arith.constant 0 : i32
    %c0_i32_0 = arith.constant 0 : i32
    %c0_i32_1 = arith.constant 0 : i32
    return %c0_i32, %c0_i32_0 : i32, i32
  }
  func.func @transform_3(%arg0: i32) -> (i32, i32) {
    %c0_i32 = arith.constant 0 : i32
    %c0_i32_0 = arith.constant 0 : i32
    %c0_i32_1 = arith.constant 0 : i32
    return %c0_i32, %c0_i32_0 : i32, i32
  }
  func.func @transform_4(%arg0: i32) -> (i32, i32) {
    %c0_i32 = arith.constant 0 : i32
    %c0_i32_0 = arith.constant 0 : i32
    %c0_i32_1 = arith.constant 0 : i32
    return %c0_i32, %c0_i32_0 : i32, i32
  }
  func.func @transform_5(%arg0: i32) -> (i32, i32) {
    %c0_i32 = arith.constant 0 : i32
    %c0_i32_0 = arith.constant 0 : i32
    %c0_i32_1 = arith.constant 0 : i32
    return %c0_i32, %c0_i32_0 : i32, i32
  }
  func.func @transform_6(%arg0: i32) -> (i32, i32) {
    %c0_i32 = arith.constant 0 : i32
    %c0_i32_0 = arith.constant 0 : i32
    %c0_i32_1 = arith.constant 0 : i32
    return %c0_i32, %c0_i32_0 : i32, i32
  }
  func.func @transform_7(%arg0: i32) -> (i32, i32) {
    %c0_i32 = arith.constant 0 : i32
    %c0_i32_0 = arith.constant 0 : i32
    return %arg0, %c0_i32 : i32, i32
  }
}

</mosaic_0001>

<llo_original>
// kernel: _mlp_forward.1
$region0: #{_mlp_forward.1}
  #allocation0 [shape = 'u32[]', space=smem, size = 0x4, offset = 0x4, fixed_abs, tag = 'smem constant byte address 0x4 - core index']
  #allocation1 [shape = 'u32[72,128]{1,0:T(1,128)}', space=vmem, size = 0x9000, scoped, tag = 'internal scratch']
  %s0 = inlined_call_operand.vmem [shape: bf16[16,128], index: 0, kind: input, shape index: {}]
  %s1 = inlined_call_operand.hbm [shape: bf16[128,128], index: 1, kind: input, shape index: {}]
  %s2 = inlined_call_operand.vmem [shape: bf16[1,128], index: 2, kind: input, shape index: {}]
  %s3 = inlined_call_operand.hbm [shape: bf16[128,128], index: 3, kind: input, shape index: {}]
  %s4 = inlined_call_operand.vmem [shape: bf16[1,128], index: 4, kind: input, shape index: {}]
  %s5 = inlined_call_operand.hbm [shape: bf16[128,128], index: 5, kind: input, shape index: {}]
  %s6 = inlined_call_operand.vmem [shape: bf16[1,128], index: 6, kind: input, shape index: {}]
  %s7 = inlined_call_operand.vmem [shape: f32[16,128], index: 7, kind: output, shape index: {}]
  %s8 = sld [smem:[#allocation0]]
  $region50: #{_mlp_forward.1} parent=0
    _
  %s10 = ssub.s32 1, %s8
  %s11 = scalar_select 0, %s10, %s8
  $region1: #{_mlp_forward.1} parent=0
    #allocation2 [shape = 'u8[32768]{0}', space=vmem, size = 0x8000, scoped, tag = 'input window, operand 1, single buffered']
    #allocation3 [shape = 's32[1]{0}', space=sflag, size = 0x4, scoped, tag = 'scoped memory for _mlp_forward.1']
    #allocation4 [shape = 'u8[32768]{0}', space=vmem, size = 0x8000, scoped, tag = 'input window, operand 3, single buffered']
    #allocation5 [shape = 's32[1]{0}', space=sflag, size = 0x4, scoped, tag = 'scoped memory for _mlp_forward.1']
    #allocation6 [shape = 'u8[32768]{0}', space=vmem, size = 0x8000, scoped, tag = 'input window, operand 5, single buffered']
    %12 = vsyncpa [#allocation3], 0
    %13 = vsyncpa [#allocation5], 0
    // Predicated region
    $region2: #{_mlp_forward.1} parent=1 // pred_check
      _
    $region3: #{_mlp_forward.1} parent=1 // pred_check_branch
      %15 = sbr.rel (0) target = $region5
    $region4: #{_mlp_forward.1} parent=1 // pred_region
      _
    $region5: #{_mlp_forward.1} parent=1 // pred_fallthru
      _
    // Predicated region
    $region6: #{_mlp_forward.1} parent=1 // pred_check
      _
    $region7: #{_mlp_forward.1} parent=1 // pred_check_branch
      %17 = sbr.rel (0) target = $region9
    $region8: #{_mlp_forward.1} parent=1 // pred_region
      %19 = vsyncadd [#allocation3], 0
      %s20 = sshll.u32 %s1, 4
      %s21 = int_to_ptr.hbm [resolvable:$true] %s20
      %s22 = sshll.u32 [#allocation2], 4
      %s23 = int_to_ptr.vmem [resolvable:$true] %s22
      %28 = dma.hbm_to_vmem [thread:$0]  %s21, 1024, %s23, [#allocation3], 64, 64, 4
    $region9: #{_mlp_forward.1} parent=1 // pred_fallthru
      _
    // Predicated region
    $region10: #{_mlp_forward.1} parent=1 // pred_check
      _
    $region11: #{_mlp_forward.1} parent=1 // pred_check_branch
      %30 = sbr.rel (0) target = $region13
    $region12: #{_mlp_forward.1} parent=1 // pred_region
      _
    $region13: #{_mlp_forward.1} parent=1 // pred_fallthru
      _
    // Predicated region
    $region14: #{_mlp_forward.1} parent=1 // pred_check
      _
    $region15: #{_mlp_forward.1} parent=1 // pred_check_branch
      %32 = sbr.rel (0) target = $region17
    $region16: #{_mlp_forward.1} parent=1 // pred_region
      %34 = vsyncadd [#allocation5], 0
      %s35 = sshll.u32 %s3, 4
      %s36 = int_to_ptr.hbm [resolvable:$true] %s35
      %s37 = sshll.u32 [#allocation4], 4
      %s38 = int_to_ptr.vmem [resolvable:$true] %s37
      %43 = dma.hbm_to_vmem [thread:$0]  %s36, 1024, %s38, [#allocation5], 64, 64, 4
    $region17: #{_mlp_forward.1} parent=1 // pred_fallthru
      _
    // Predicated region
    $region18: #{_mlp_forward.1} parent=1 // pred_check
      _
    $region19: #{_mlp_forward.1} parent=1 // pred_check_branch
      %45 = sbr.rel (0) target = $region21
    $region20: #{_mlp_forward.1} parent=1 // pred_region
      _
    $region21: #{_mlp_forward.1} parent=1 // pred_fallthru
      _
    // Predicated region
    $region22: #{_mlp_forward.1} parent=1 // pred_check
      _
    $region23: #{_mlp_forward.1} parent=1 // pred_check_branch
      %47 = sbr.rel (0) target = $region25
    $region24: #{_mlp_forward.1} parent=1 // pred_region
      %49 = vsyncadd [#allocation5], 0
      %s50 = sshll.u32 %s5, 4
      %s51 = int_to_ptr.hbm [resolvable:$true] %s50
      %s52 = sshll.u32 [#allocation6], 4
      %s53 = int_to_ptr.vmem [resolvable:$true] %s52
      %58 = dma.hbm_to_vmem [thread:$0]  %s51, 1024, %s53, [#allocation5], 64, 64, 4
    $region25: #{_mlp_forward.1} parent=1 // pred_fallthru
      _
    // Predicated region
    $region26: #{_mlp_forward.1} parent=1 // pred_check
      _
    $region27: #{_mlp_forward.1} parent=1 // pred_check_branch
      %60 = sbr.rel (0) target = $region29
    $region28: #{_mlp_forward.1} parent=1 // pred_region
      _
    $region29: #{_mlp_forward.1} parent=1 // pred_fallthru
      _
    // Predicated region
    $region30: #{_mlp_forward.1} parent=1 // pred_check
      _
    $region31: #{_mlp_forward.1} parent=1 // pred_check_branch
      %62 = sbr.rel (0) target = $region33
    $region32: #{_mlp_forward.1} parent=1 // pred_region
      %64 = dma.done [#allocation3], 1024
    $region33: #{_mlp_forward.1} parent=1 // pred_fallthru
      _
    // Predicated region
    $region34: #{_mlp_forward.1} parent=1 // pred_check
      _
    $region35: #{_mlp_forward.1} parent=1 // pred_check_branch
      %66 = sbr.rel (0) target = $region37
    $region36: #{_mlp_forward.1} parent=1 // pred_region
      %68 = dma.done [#allocation5], 1024
    $region37: #{_mlp_forward.1} parent=1 // pred_fallthru
      _
    // Predicated region
    $region38: #{_mlp_forward.1} parent=1 // pred_check
      _
    $region39: #{_mlp_forward.1} parent=1 // pred_check_branch
      %70 = sbr.rel (0) target = $region41
    $region40: #{_mlp_forward.1} parent=1 // pred_region
      %72 = dma.done [#allocation5], 1024
    $region41: #{_mlp_forward.1} parent=1 // pred_fallthru
      _
    %v73 = vld [vmem:[%s0] sm:$0xf]
    %v74 = vld [vmem:[%s0 + $0x4] sm:$0xf]
    %v75 = vld [vmem:[#allocation2] sm:$0xf]
    %v76 = vld [vmem:[#allocation2 + $0x4] sm:$0xf]
    %v77 = vld [vmem:[#allocation2 + $0x8] sm:$0xf]
    %v78 = vld [vmem:[#allocation2 + $0xc] sm:$0xf]
    %v79 = vld [vmem:[#allocation2 + $0x10] sm:$0xf]
    %v80 = vld [vmem:[#allocation2 + $0x14] sm:$0xf]
    %v81 = vld [vmem:[#allocation2 + $0x18] sm:$0xf]
    %v82 = vld [vmem:[#allocation2 + $0x1c] sm:$0xf]
    %v83 = vld [vmem:[#allocation2 + $0x20] sm:$0xf]
    %v84 = vld [vmem:[#allocation2 + $0x24] sm:$0xf]
    %v85 = vld [vmem:[#allocation2 + $0x28] sm:$0xf]
    %v86 = vld [vmem:[#allocation2 + $0x2c] sm:$0xf]
    %v87 = vld [vmem:[#allocation2 + $0x30] sm:$0xf]
    %v88 = vld [vmem:[#allocation2 + $0x34] sm:$0xf]
    %v89 = vld [vmem:[#allocation2 + $0x38] sm:$0xf]
    %v90 = vld [vmem:[#allocation2 + $0x3c] sm:$0xf]
    %v91 = vld [vmem:[%s2] sm:$0x1]
    %v92 = vunpack.c.l.bf16 %v91
    %v93 = vperm.slane %v92, 0
    %v96 = vunpack.c.l.b16 %v73
    %v97 = vunpack.c.l.b16 %v74
    %v98 = vpack.c.b16 %v97, %v96
    %v116 = vunpack.c.l.b16 %v75
    %v117 = vunpack.c.l.b16 %v76
    %v118 = vunpack.c.l.b16 %v77
    %v119 = vunpack.c.l.b16 %v78
    %v120 = vunpack.c.l.b16 %v79
    %v121 = vunpack.c.l.b16 %v80
    %v122 = vunpack.c.l.b16 %v81
    %v123 = vunpack.c.l.b16 %v82
    %v124 = vunpack.c.l.b16 %v83
    %v125 = vunpack.c.l.b16 %v84
    %v126 = vunpack.c.l.b16 %v85
    %v127 = vunpack.c.l.b16 %v86
    %v128 = vunpack.c.l.b16 %v87
    %v129 = vunpack.c.l.b16 %v88
    %v130 = vunpack.c.l.b16 %v89
    %v131 = vunpack.c.l.b16 %v90
    %v132 = vpack.c.b16 %v117, %v116
    %v133 = vpack.c.b16 %v119, %v118
    %v134 = vpack.c.b16 %v121, %v120
    %v135 = vpack.c.b16 %v123, %v122
    %v136 = vpack.c.b16 %v125, %v124
    %v137 = vpack.c.b16 %v127, %v126
    %v138 = vpack.c.b16 %v129, %v128
    %v139 = vpack.c.b16 %v131, %v130
    %148 = vmatpush.bf16.msra.mxu0 %v139
    %149 = vmatpush.bf16.msra.mxu0 %v138
    %150 = vmatpush.bf16.msra.mxu0 %v137
    %151 = vmatpush.bf16.msra.mxu0 %v136
    %152 = vmatpush.bf16.msra.mxu0 %v135
    %153 = vmatpush.bf16.msra.mxu0 %v134
    %154 = vmatpush.bf16.msra.mxu0 %v133
    %155 = vmatpush.bf16.msra.mxu0 %v132
    %156 = vmatmul.bf16.gmra.mxu0 %v98
    %v157 = vpop.f32.mrf.mxu0
    %v158 = vadd.f32 %v93, %v157
    %v159 = vpop.f32.mrf.mxu0
    %v160 = vadd.f32 %v93, %v159
    %161 = vdwg.mxu0
    %v162 = vmax.f32 %v158, 0.0
    %v163 = vmax.f32 %v160, 0.0
    %v164 = vpack.c.bf16 %v163, %v162
    %v165 = vld [vmem:[#allocation4] sm:$0xf]
    %v166 = vld [vmem:[#allocation4 + $0x4] sm:$0xf]
    %v167 = vld [vmem:[#allocation4 + $0x8] sm:$0xf]
    %v168 = vld [vmem:[#allocation4 + $0xc] sm:$0xf]
    %v169 = vld [vmem:[#allocation4 + $0x10] sm:$0xf]
    %v170 = vld [vmem:[#allocation4 + $0x14] sm:$0xf]
    %v171 = vld [vmem:[#allocation4 + $0x18] sm:$0xf]
    %v172 = vld [vmem:[#allocation4 + $0x1c] sm:$0xf]
    %v173 = vld [vmem:[#allocation4 + $0x20] sm:$0xf]
    %v174 = vld [vmem:[#allocation4 + $0x24] sm:$0xf]
    %v175 = vld [vmem:[#allocation4 + $0x28] sm:$0xf]
    %v176 = vld [vmem:[#allocation4 + $0x2c] sm:$0xf]
    %v177 = vld [vmem:[#allocation4 + $0x30] sm:$0xf]
    %v178 = vld [vmem:[#allocation4 + $0x34] sm:$0xf]
    %v179 = vld [vmem:[#allocation4 + $0x38] sm:$0xf]
    %v180 = vld [vmem:[#allocation4 + $0x3c] sm:$0xf]
    %v181 = vld [vmem:[%s4] sm:$0x1]
    %v182 = vunpack.c.l.bf16 %v181
    %v183 = vperm.slane %v182, 0
    %v200 = vunpack.c.l.b16 %v165
    %v201 = vunpack.c.l.b16 %v166
    %v202 = vunpack.c.l.b16 %v167
    %v203 = vunpack.c.l.b16 %v168
    %v204 = vunpack.c.l.b16 %v169
    %v205 = vunpack.c.l.b16 %v170
    %v206 = vunpack.c.l.b16 %v171
    %v207 = vunpack.c.l.b16 %v172
    %v208 = vunpack.c.l.b16 %v173
    %v209 = vunpack.c.l.b16 %v174
    %v210 = vunpack.c.l.b16 %v175
    %v211 = vunpack.c.l.b16 %v176
    %v212 = vunpack.c.l.b16 %v177
    %v213 = vunpack.c.l.b16 %v178
    %v214 = vunpack.c.l.b16 %v179
    %v215 = vunpack.c.l.b16 %v180
    %v216 = vpack.c.b16 %v201, %v200
    %v217 = vpack.c.b16 %v203, %v202
    %v218 = vpack.c.b16 %v205, %v204
    %v219 = vpack.c.b16 %v207, %v206
    %v220 = vpack.c.b16 %v209, %v208
    %v221 = vpack.c.b16 %v211, %v210
    %v222 = vpack.c.b16 %v213, %v212
    %v223 = vpack.c.b16 %v215, %v214
    %232 = vmatpush.bf16.msra.mxu0 %v223
    %233 = vmatpush.bf16.msra.mxu0 %v222
    %234 = vmatpush.bf16.msra.mxu0 %v221
    %235 = vmatpush.bf16.msra.mxu0 %v220
    %236 = vmatpush.bf16.msra.mxu0 %v219
    %237 = vmatpush.bf16.msra.mxu0 %v218
    %238 = vmatpush.bf16.msra.mxu0 %v217
    %239 = vmatpush.bf16.msra.mxu0 %v216
    %240 = vmatmul.bf16.gmra.mxu0 %v164
    %v241 = vpop.f32.mrf.mxu0
    %v242 = vadd.f32 %v183, %v241
    %v243 = vpop.f32.mrf.mxu0
    %v244 = vadd.f32 %v183, %v243
    %245 = vdwg.mxu0
    %v246 = vmax.f32 %v242, 0.0
    %v247 = vmax.f32 %v244, 0.0
    %v248 = vpack.c.bf16 %v247, %v246
    %v249 = vld [vmem:[#allocation6] sm:$0xf]
    %v250 = vld [vmem:[#allocation6 + $0x4] sm:$0xf]
    %v251 = vld [vmem:[#allocation6 + $0x8] sm:$0xf]
    %v252 = vld [vmem:[#allocation6 + $0xc] sm:$0xf]
    %v253 = vld [vmem:[#allocation6 + $0x10] sm:$0xf]
    %v254 = vld [vmem:[#allocation6 + $0x14] sm:$0xf]
    %v255 = vld [vmem:[#allocation6 + $0x18] sm:$0xf]
    %v256 = vld [vmem:[#allocation6 + $0x1c] sm:$0xf]
    %v257 = vld [vmem:[#allocation6 + $0x20] sm:$0xf]
    %v258 = vld [vmem:[#allocation6 + $0x24] sm:$0xf]
    %v259 = vld [vmem:[#allocation6 + $0x28] sm:$0xf]
    %v260 = vld [vmem:[#allocation6 + $0x2c] sm:$0xf]
    %v261 = vld [vmem:[#allocation6 + $0x30] sm:$0xf]
    %v262 = vld [vmem:[#allocation6 + $0x34] sm:$0xf]
    %v263 = vld [vmem:[#allocation6 + $0x38] sm:$0xf]
    %v264 = vld [vmem:[#allocation6 + $0x3c] sm:$0xf]
    %v265 = vld [vmem:[%s6] sm:$0x1]
    %v266 = vunpack.c.l.bf16 %v265
    %v267 = vperm.slane %v266, 0
    %v284 = vunpack.c.l.b16 %v249
    %v285 = vunpack.c.l.b16 %v250
    %v286 = vunpack.c.l.b16 %v251
    %v287 = vunpack.c.l.b16 %v252
    %v288 = vunpack.c.l.b16 %v253
    %v289 = vunpack.c.l.b16 %v254
    %v290 = vunpack.c.l.b16 %v255
    %v291 = vunpack.c.l.b16 %v256
    %v292 = vunpack.c.l.b16 %v257
    %v293 = vunpack.c.l.b16 %v258
    %v294 = vunpack.c.l.b16 %v259
    %v295 = vunpack.c.l.b16 %v260
    %v296 = vunpack.c.l.b16 %v261
    %v297 = vunpack.c.l.b16 %v262
    %v298 = vunpack.c.l.b16 %v263
    %v299 = vunpack.c.l.b16 %v264
    %v300 = vpack.c.b16 %v285, %v284
    %v301 = vpack.c.b16 %v287, %v286
    %v302 = vpack.c.b16 %v289, %v288
    %v303 = vpack.c.b16 %v291, %v290
    %v304 = vpack.c.b16 %v293, %v292
    %v305 = vpack.c.b16 %v295, %v294
    %v306 = vpack.c.b16 %v297, %v296
    %v307 = vpack.c.b16 %v299, %v298
    %316 = vmatpush.bf16.msra.mxu0 %v307
    %317 = vmatpush.bf16.msra.mxu0 %v306
    %318 = vmatpush.bf16.msra.mxu0 %v305
    %319 = vmatpush.bf16.msra.mxu0 %v304
    %320 = vmatpush.bf16.msra.mxu0 %v303
    %321 = vmatpush.bf16.msra.mxu0 %v302
    %322 = vmatpush.bf16.msra.mxu0 %v301
    %323 = vmatpush.bf16.msra.mxu0 %v300
    %324 = vmatmul.bf16.gmra.mxu0 %v248
    %v325 = vpop.f32.mrf.mxu0
    %v326 = vadd.f32 %v267, %v325
    %v327 = vpop.f32.mrf.mxu0
    %v328 = vadd.f32 %v267, %v327
    %329 = vdwg.mxu0
    %330 = vst [vmem:[%s7] sm:$0xff] %v326
    %331 = vst [vmem:[%s7 + $0x8] sm:$0xff] %v328
    // Predicated region
    $region42: #{_mlp_forward.1} parent=1 // pred_check
      _
    $region43: #{_mlp_forward.1} parent=1 // pred_check_branch
      %333 = sbr.rel (0) target = $region45
    $region44: #{_mlp_forward.1} parent=1 // pred_region
      _
    $region45: #{_mlp_forward.1} parent=1 // pred_fallthru
      _
    // Predicated region
    $region46: #{_mlp_forward.1} parent=1 // pred_check
      _
    $region47: #{_mlp_forward.1} parent=1 // pred_check_branch
      %335 = sbr.rel (0) target = $region49
    $region48: #{_mlp_forward.1} parent=1 // pred_region
      _
    $region49: #{_mlp_forward.1} parent=1 // pred_fallthru
      _
    %336 = vsyncpa [#allocation3], 1
    %337 = vsyncpa [#allocation5], 1

</llo_original>
